<compile_context>
chip_gen: v7x
topology: tpu7x:2x2x1
jax: 0.10.0
libtpu: 0.0.40
codegen_flags: <defaults>
</compile_context>

<pallas_src>
import functools

import jax
import jax.numpy as jnp
from jax import lax
from jax.experimental import pallas as pl
from jax.experimental.pallas import tpu as pltpu


def _dice_partial_kernel(score_ref, lab_ref, out_ref,
                         inter_acc, ysum_acc, zsum_acc,
                         *, block_rows, chunks_per_split, n_valid,
                         apply_softmax, need_mask):
    """One (batch, spatial-split) cell: accumulate per-class partial sums.

    score_ref : (C, block_rows, 128) float   class scores / logits
    lab_ref   : (1, block_rows, 128) int     class ids
    out_ref   : (C, 3) float32               [intersect, y_sum, z_sum]
    *_acc     : (C, 128) float32 scratch     narrow accumulators
    """
    p = pl.program_id(1)          # spatial split axis (parallel)
    k = pl.program_id(2)          # reduction chunk axis (arbitrary, last)

    @pl.when(k == 0)
    def _():
        inter_acc[...] = jnp.zeros_like(inter_acc)
        ysum_acc[...] = jnp.zeros_like(ysum_acc)
        zsum_acc[...] = jnp.zeros_like(zsum_acc)

    score = score_ref[...].astype(jnp.float32)       # (C, ts, 128)
    labels = lab_ref[...].astype(jnp.int32)          # (1, ts, 128)

    if apply_softmax:
        # Class-axis softmax fused in-kernel: all C classes are in the block,
        # so this is C-1 elementwise max/add passes plus one EUP exp.
        m = jnp.max(score, axis=0, keepdims=True)
        e = jnp.exp(score - m)
        score = e / jnp.sum(e, axis=0, keepdims=True)

    if need_mask:
        # Mask elements past the true problem size (grid overshoot and/or the
        # 128-lane pad). Computed from the *logical* block index so it also
        # neutralizes blocks whose index_map was clamped.
        blk = p * chunks_per_split + k
        row = lax.broadcasted_iota(jnp.int32, (1, block_rows, 128), 1)
        lane = lax.broadcasted_iota(jnp.int32, (1, block_rows, 128), 2)
        pos = (blk * block_rows + row) * 128 + lane
        valid = pos < n_valid
        score = jnp.where(valid, score, 0.0)
        labels = jnp.where(valid, labels, -1)

    # one-hot: class c matches where label == c (labels broadcast over C)
    c_ids = lax.broadcasted_iota(jnp.int32, (score.shape[0], 1, 1), 0)
    onehot = (labels == c_ids).astype(jnp.float32)   # (C, ts, 128)

    # Per-step sublane reduction into narrow (C, 128) accumulators.
    inter_acc[...] += jnp.sum(score * onehot, axis=1)
    ysum_acc[...] += jnp.sum(onehot, axis=1)          # onehot^2 == onehot
    zsum_acc[...] += jnp.sum(score * score, axis=1)

    @pl.when(k == pl.num_programs(2) - 1)
    def _():
        out_ref[:, 0:1] = jnp.sum(inter_acc[...], axis=1, keepdims=True)
        out_ref[:, 1:2] = jnp.sum(ysum_acc[...], axis=1, keepdims=True)
        out_ref[:, 2:3] = jnp.sum(zsum_acc[...], axis=1, keepdims=True)


def _pick_block_rows(rows, n_classes, score_bytes, label_bytes,
                     budget_bytes=12 * 2 ** 20, cap=2048):
    """Largest row tile (multiple of 8) within a double-buffered VMEM budget
    that is safe on v5e/v6e/v7x default scoped VMEM limits."""
    per_row = 128 * (n_classes * score_bytes + label_bytes)
    ts = budget_bytes // (2 * per_row)
    ts = int(max(8, min(cap, ts)))
    ts -= ts % 8
    return rows if rows <= ts else ts


def _per_class_sums(score4, labels4, *, n_valid, apply_softmax, block_rows):
    """score4: (B, C, R, 128), labels4: (B, 1, R, 128) -> (B, P, C, 3) f32."""
    B, C, R, _ = score4.shape
    if block_rows is None:
        block_rows = _pick_block_rows(R, C, score4.dtype.itemsize,
                                      labels4.dtype.itemsize)
    ts = int(block_rows)
    n_blocks = -(-R // ts)
    # Spatial parallel split: engage the 2nd TensorCore on v7x when B == 1.
    P = 2 if (B == 1 and n_blocks >= 2) else 1
    K = -(-n_blocks // P)
    need_mask = (P * K * ts * 128) != n_valid
    max_blk = n_blocks - 1

    def in_map(b, p, k):
        return (b, 0, jnp.minimum(p * K + k, max_blk), 0)

    kern = functools.partial(
        _dice_partial_kernel, block_rows=ts, chunks_per_split=K,
        n_valid=n_valid, apply_softmax=apply_softmax, need_mask=need_mask)

    return pl.pallas_call(
        kern,
        out_shape=jax.ShapeDtypeStruct((B, P, C, 3), jnp.float32),
        grid_spec=pltpu.PrefetchScalarGridSpec(
            num_scalar_prefetch=0,
            grid=(B, P, K),
            in_specs=[
                pl.BlockSpec((None, C, ts, 128), in_map),
                pl.BlockSpec((None, 1, ts, 128), in_map),
            ],
            out_specs=pl.BlockSpec((None, None, C, 3),
                                   lambda b, p, k: (b, p, 0, 0)),
            scratch_shapes=[
                pltpu.VMEM((C, 128), jnp.float32),
                pltpu.VMEM((C, 128), jnp.float32),
                pltpu.VMEM((C, 128), jnp.float32),
            ],
        ),
        compiler_params=pltpu.CompilerParams(
            dimension_semantics=("parallel", "parallel", "arbitrary")),
    )(score4, labels4)


@functools.partial(jax.jit, static_argnames=("n_classes", "softmax", "block_rows"))
def dice_loss(inputs, target, weight=None, n_classes=4, softmax=False,
              block_rows=None):
    """Pallas equivalent of DiceLoss.forward.

    inputs: (B, C, H, W) float (f32 or bf16); target: (B, 1, H, W) class ids.
    """
    B, C, H, W = inputs.shape
    assert C == n_classes, "predict & target shape do not match"
    N = H * W
    R = -(-N // 128)
    Np = R * 128

    score = inputs.reshape(B, C, N)          # contiguous reshape, no HBM pass
    labels = target.reshape(B, 1, N)
    if not jnp.issubdtype(labels.dtype, jnp.integer):
        labels = labels.astype(jnp.int32)
    if Np != N:
        # TODO(synk): rare path (H*W not a multiple of 128) costs one extra
        # HBM pass for the pad copy; typical image sizes take the free path.
        score = jnp.pad(score, ((0, 0), (0, 0), (0, Np - N)))
        labels = jnp.pad(labels, ((0, 0), (0, 0), (0, Np - N)),
                         constant_values=-1)
    score4 = score.reshape(B, C, R, 128)
    labels4 = labels.reshape(B, 1, R, 128)

    sums = _per_class_sums(score4, labels4, n_valid=N,
                           apply_softmax=softmax, block_rows=block_rows)
    totals = jnp.sum(sums, axis=(0, 1))              # (C, 3); sums are linear
    inter, y_sum, z_sum = totals[:, 0], totals[:, 1], totals[:, 2]

    smooth = 1e-05
    dice = 1.0 - (2.0 * inter + smooth) / (z_sum + y_sum + smooth)   # (C,)

    if weight is None:
        weight = jnp.ones((n_classes,), jnp.float32)
    else:
        weight = jnp.asarray(weight, jnp.float32)
    return jnp.sum(dice * weight) / n_classes


def _reference(inputs, target, n_classes, weight=None, softmax=False):
    """Pure-JAX reference matching the PyTorch module."""
    if softmax:
        inputs = jax.nn.softmax(inputs, axis=1)
    if weight is None:
        weight = [1.0] * n_classes
    smooth = 1e-05
    loss = 0.0
    for i in range(n_classes):
        score = inputs[:, i].astype(jnp.float32)
        tgt = (target[:, 0] == i).astype(jnp.float32)
        intersect = jnp.sum(score * tgt)
        y_sum = jnp.sum(tgt * tgt)
        z_sum = jnp.sum(score * score)
        dice = 1.0 - (2 * intersect + smooth) / (z_sum + y_sum + smooth)
        loss = loss + dice * weight[i]
    return loss / n_classes


if __name__ == "__main__":
    key = jax.random.PRNGKey(0)
    k1, k2, k3, k4 = jax.random.split(key, 4)

    # --- Test 1: probability inputs, no softmax -----------------------------
    B, C, H, W = 2, 4, 16, 16
    logits = jax.random.normal(k1, (B, C, H, W), jnp.float32)
    probs = jax.nn.softmax(logits, axis=1)
    target = jax.random.randint(k2, (B, 1, H, W), 0, C)

    loss = jax.block_until_ready(dice_loss(probs, target, n_classes=C))
    ref = _reference(probs, target, C)
    assert jnp.allclose(loss, ref, atol=1e-5, rtol=1e-5), (loss, ref)

    # --- Test 2: fused in-kernel softmax + per-class weights ----------------
    w = jnp.array([1.0, 0.5, 2.0, 1.0], jnp.float32)
    loss2 = jax.block_until_ready(
        dice_loss(logits, target, weight=w, n_classes=C, softmax=True))
    ref2 = _reference(logits, target, C, weight=w, softmax=True)
    assert jnp.allclose(loss2, ref2, atol=1e-5, rtol=1e-4), (loss2, ref2)

    # --- Test 3: B=1 multi-chunk grid --------------------------------------
    # 48*64 = 3072 = 24 rows of 128; block_rows=8 -> 3 blocks, split into a
    # (parallel=2, arbitrary=2) grid that overshoots -> exercises the spatial
    # split, the clamped index_map and the in-kernel tail mask (no jnp.pad).
    H3, W3 = 48, 64
    logits3 = jax.random.normal(k3, (1, C, H3, W3), jnp.float32)
    probs3 = jax.nn.softmax(logits3, axis=1)
    target3 = jax.random.randint(k4, (1, 1, H3, W3), 0, C)
    loss3 = jax.block_until_ready(
        dice_loss(probs3, target3, n_classes=C, block_rows=8))
    ref3 = _reference(probs3, target3, C)
    assert jnp.allclose(loss3, ref3, atol=1e-5, rtol=1e-5), (loss3, ref3)

    print("KERNEL_OK")
</pallas_src>

<mosaic_0001>
module attributes {stable_mosaic.version = 11 : i64} {
  func.func @_dice_partial_kernel(%arg0: i32, %arg1: i32, %arg2: i32, %arg3: memref<1x4x2x128xf32, #tpu.memory_space<vmem>>, %arg4: memref<1x1x2x128xi32, #tpu.memory_space<vmem>>, %arg5: memref<1x1x4x3xf32, #tpu.memory_space<vmem>>, %arg6: memref<4x128xf32, #tpu.memory_space<vmem>>, %arg7: memref<4x128xf32, #tpu.memory_space<vmem>>, %arg8: memref<4x128xf32, #tpu.memory_space<vmem>>) attributes {dimension_semantics = [#tpu.dimension_semantics<parallel>, #tpu.dimension_semantics<parallel>, #tpu.dimension_semantics<arbitrary>], iteration_bounds = array<i64: 2, 1, 1>, scalar_prefetch = 0 : i64, scratch_operands = 3 : i64, tpu.core_type = #tpu.core_type<tc>, window_params = [{transform_indices = @transform_0, window_bounds = array<i64: 1, 4, 2, 128>}, {transform_indices = @transform_1, window_bounds = array<i64: 1, 1, 2, 128>}, {transform_indices = @transform_2, window_bounds = array<i64: 1, 1, 4, 3>}]} {
    %c0_i32 = arith.constant 0 : i32
    %0 = arith.cmpi eq, %arg2, %c0_i32 : i32
    %1 = arith.extui %0 : i1 to i32
    %c0_i32_0 = arith.constant 0 : i32
    %2 = arith.cmpi ne, %1, %c0_i32_0 : i32
    scf.if %2 {
      %cst_24 = arith.constant 0.000000e+00 : f32
      %30 = vector.broadcast %cst_24 : f32 to vector<4x128xf32>
      %c0_25 = arith.constant 0 : index
      %c0_26 = arith.constant 0 : index
      %31 = vector.load %arg6[%c0_25, %c0_26] : memref<4x128xf32, #tpu.memory_space<vmem>>, vector<4x128xf32>
      tpu.vector_store %arg6[%c0_25, %c0_26], %30 {strides = array<i32>} : memref<4x128xf32, #tpu.memory_space<vmem>>, vector<4x128xf32>,
      %cst_27 = arith.constant 0.000000e+00 : f32
      %32 = vector.broadcast %cst_27 : f32 to vector<4x128xf32>
      %c0_28 = arith.constant 0 : index
      %c0_29 = arith.constant 0 : index
      %33 = vector.load %arg7[%c0_28, %c0_29] : memref<4x128xf32, #tpu.memory_space<vmem>>, vector<4x128xf32>
      tpu.vector_store %arg7[%c0_28, %c0_29], %32 {strides = array<i32>} : memref<4x128xf32, #tpu.memory_space<vmem>>, vector<4x128xf32>,
      %cst_30 = arith.constant 0.000000e+00 : f32
      %34 = vector.broadcast %cst_30 : f32 to vector<4x128xf32>
      %c0_31 = arith.constant 0 : index
      %c0_32 = arith.constant 0 : index
      %35 = vector.load %arg8[%c0_31, %c0_32] : memref<4x128xf32, #tpu.memory_space<vmem>>, vector<4x128xf32>
      tpu.vector_store %arg8[%c0_31, %c0_32], %34 {strides = array<i32>} : memref<4x128xf32, #tpu.memory_space<vmem>>, vector<4x128xf32>,
    } else {
    }
    %c0 = arith.constant 0 : index
    %c0_1 = arith.constant 0 : index
    %c0_2 = arith.constant 0 : index
    %c0_3 = arith.constant 0 : index
    %3 = vector.load %arg3[%c0, %c0_1, %c0_2, %c0_3] : memref<1x4x2x128xf32, #tpu.memory_space<vmem>>, vector<1x4x2x128xf32>
    %4 = vector.shape_cast %3 : vector<1x4x2x128xf32> to vector<4x2x128xf32>
    %c0_4 = arith.constant 0 : index
    %c0_5 = arith.constant 0 : index
    %c0_6 = arith.constant 0 : index
    %c0_7 = arith.constant 0 : index
    %5 = vector.load %arg4[%c0_4, %c0_5, %c0_6, %c0_7] : memref<1x1x2x128xi32, #tpu.memory_space<vmem>>, vector<1x1x2x128xi32>
    %6 = vector.shape_cast %5 : vector<1x1x2x128xi32> to vector<1x2x128xi32>
    %7 = tpu.iota {dimensions = array<i32: 0>} : vector<4x1x1xi32>
    %8 = vector.broadcast %6 : vector<1x2x128xi32> to vector<4x2x128xi32>
    %9 = vector.broadcast %7 : vector<4x1x1xi32> to vector<4x2x128xi32>
    %10 = arith.cmpi eq, %8, %9 : vector<4x2x128xi32>
    %11 = arith.extui %10 : vector<4x2x128xi1> to vector<4x2x128xi32>
    %12 = arith.sitofp %11 : vector<4x2x128xi32> to vector<4x2x128xf32>
    %c0_8 = arith.constant 0 : index
    %c0_9 = arith.constant 0 : index
    %13 = vector.load %arg6[%c0_8, %c0_9] : memref<4x128xf32, #tpu.memory_space<vmem>>, vector<4x128xf32>
    %14 = arith.mulf %4, %12 : vector<4x2x128xf32>
    %cst = arith.constant dense<0.000000e+00> : vector<4x128xf32>
    %15 = vector.multi_reduction <add>, %14, %cst [1] : vector<4x2x128xf32> to vector<4x128xf32>
    %16 = arith.addf %13, %15 : vector<4x128xf32>
    %c0_10 = arith.constant 0 : index
    %c0_11 = arith.constant 0 : index
    %17 = vector.load %arg6[%c0_10, %c0_11] : memref<4x128xf32, #tpu.memory_space<vmem>>, vector<4x128xf32>
    tpu.vector_store %arg6[%c0_10, %c0_11], %16 {strides = array<i32>} : memref<4x128xf32, #tpu.memory_space<vmem>>, vector<4x128xf32>,
    %c0_12 = arith.constant 0 : index
    %c0_13 = arith.constant 0 : index
    %18 = vector.load %arg7[%c0_12, %c0_13] : memref<4x128xf32, #tpu.memory_space<vmem>>, vector<4x128xf32>
    %cst_14 = arith.constant dense<0.000000e+00> : vector<4x128xf32>
    %19 = vector.multi_reduction <add>, %12, %cst_14 [1] : vector<4x2x128xf32> to vector<4x128xf32>
    %20 = arith.addf %18, %19 : vector<4x128xf32>
    %c0_15 = arith.constant 0 : index
    %c0_16 = arith.constant 0 : index
    %21 = vector.load %arg7[%c0_15, %c0_16] : memref<4x128xf32, #tpu.memory_space<vmem>>, vector<4x128xf32>
    tpu.vector_store %arg7[%c0_15, %c0_16], %20 {strides = array<i32>} : memref<4x128xf32, #tpu.memory_space<vmem>>, vector<4x128xf32>,
    %c0_17 = arith.constant 0 : index
    %c0_18 = arith.constant 0 : index
    %22 = vector.load %arg8[%c0_17, %c0_18] : memref<4x128xf32, #tpu.memory_space<vmem>>, vector<4x128xf32>
    %23 = arith.mulf %4, %4 : vector<4x2x128xf32>
    %cst_19 = arith.constant dense<0.000000e+00> : vector<4x128xf32>
    %24 = vector.multi_reduction <add>, %23, %cst_19 [1] : vector<4x2x128xf32> to vector<4x128xf32>
    %25 = arith.addf %22, %24 : vector<4x128xf32>
    %c0_20 = arith.constant 0 : index
    %c0_21 = arith.constant 0 : index
    %26 = vector.load %arg8[%c0_20, %c0_21] : memref<4x128xf32, #tpu.memory_space<vmem>>, vector<4x128xf32>
    tpu.vector_store %arg8[%c0_20, %c0_21], %25 {strides = array<i32>} : memref<4x128xf32, #tpu.memory_space<vmem>>, vector<4x128xf32>,
    %c0_i32_22 = arith.constant 0 : i32
    %27 = arith.cmpi eq, %arg2, %c0_i32_22 : i32
    %28 = arith.extui %27 : i1 to i32
    %c0_i32_23 = arith.constant 0 : i32
    %29 = arith.cmpi ne, %28, %c0_i32_23 : i32
    scf.if %29 {
      %c0_24 = arith.constant 0 : index
      %c0_25 = arith.constant 0 : index
      %30 = vector.load %arg6[%c0_24, %c0_25] : memref<4x128xf32, #tpu.memory_space<vmem>>, vector<4x128xf32>
      %cst_26 = arith.constant dense<0.000000e+00> : vector<4xf32>
      %31 = vector.multi_reduction <add>, %30, %cst_26 [1] : vector<4x128xf32> to vector<4xf32>
      %32 = vector.shape_cast %31 : vector<4xf32> to vector<4x1xf32>
      %c0_27 = arith.constant 0 : index
      %c0_28 = arith.constant 0 : index
      %c0_29 = arith.constant 0 : index
      %c0_30 = arith.constant 0 : index
      %33 = vector.load %arg5[%c0_27, %c0_28, %c0_29, %c0_30] : memref<1x1x4x3xf32, #tpu.memory_space<vmem>>, vector<1x1x4x1xf32>
      %34 = vector.shape_cast %33 : vector<1x1x4x1xf32> to vector<4x1xf32>
      %35 = vector.shape_cast %32 : vector<4x1xf32> to vector<1x1x4x1xf32>
      tpu.vector_store %arg5[%c0_27, %c0_28, %c0_29, %c0_30], %35 {strides = array<i32>} : memref<1x1x4x3xf32, #tpu.memory_space<vmem>>, vector<1x1x4x1xf32>,
      %c0_31 = arith.constant 0 : index
      %c0_32 = arith.constant 0 : index
      %36 = vector.load %arg7[%c0_31, %c0_32] : memref<4x128xf32, #tpu.memory_space<vmem>>, vector<4x128xf32>
      %cst_33 = arith.constant dense<0.000000e+00> : vector<4xf32>
      %37 = vector.multi_reduction <add>, %36, %cst_33 [1] : vector<4x128xf32> to vector<4xf32>
      %38 = vector.shape_cast %37 : vector<4xf32> to vector<4x1xf32>
      %c0_34 = arith.constant 0 : index
      %c0_35 = arith.constant 0 : index
      %c0_36 = arith.constant 0 : index
      %c1 = arith.constant 1 : index
      %39 = vector.load %arg5[%c0_34, %c0_35, %c0_36, %c1] : memref<1x1x4x3xf32, #tpu.memory_space<vmem>>, vector<1x1x4x1xf32>
      %40 = vector.shape_cast %39 : vector<1x1x4x1xf32> to vector<4x1xf32>
      %41 = vector.shape_cast %38 : vector<4x1xf32> to vector<1x1x4x1xf32>
      tpu.vector_store %arg5[%c0_34, %c0_35, %c0_36, %c1], %41 {strides = array<i32>} : memref<1x1x4x3xf32, #tpu.memory_space<vmem>>, vector<1x1x4x1xf32>,
      %c0_37 = arith.constant 0 : index
      %c0_38 = arith.constant 0 : index
      %42 = vector.load %arg8[%c0_37, %c0_38] : memref<4x128xf32, #tpu.memory_space<vmem>>, vector<4x128xf32>
      %cst_39 = arith.constant dense<0.000000e+00> : vector<4xf32>
      %43 = vector.multi_reduction <add>, %42, %cst_39 [1] : vector<4x128xf32> to vector<4xf32>
      %44 = vector.shape_cast %43 : vector<4xf32> to vector<4x1xf32>
      %c0_40 = arith.constant 0 : index
      %c0_41 = arith.constant 0 : index
      %c0_42 = arith.constant 0 : index
      %c2 = arith.constant 2 : index
      %45 = vector.load %arg5[%c0_40, %c0_41, %c0_42, %c2] : memref<1x1x4x3xf32, #tpu.memory_space<vmem>>, vector<1x1x4x1xf32>
      %46 = vector.shape_cast %45 : vector<1x1x4x1xf32> to vector<4x1xf32>
      %47 = vector.shape_cast %44 : vector<4x1xf32> to vector<1x1x4x1xf32>
      tpu.vector_store %arg5[%c0_40, %c0_41, %c0_42, %c2], %47 {strides = array<i32>} : memref<1x1x4x3xf32, #tpu.memory_space<vmem>>, vector<1x1x4x1xf32>,
    } else {
    }
    return
  }
  func.func @transform_0(%arg0: i32, %arg1: i32, %arg2: i32) -> (i32, i32, i32, i32) {
    %c1_i32 = arith.constant 1 : i32
    %0 = arith.muli %arg1, %c1_i32 : i32
    %1 = arith.addi %0, %arg2 : i32
    %c0_i32 = arith.constant 0 : i32
    %2 = arith.minsi %1, %c0_i32 : i32
    %c0_i32_0 = arith.constant 0 : i32
    %c0_i32_1 = arith.constant 0 : i32
    %c0_i32_2 = arith.constant 0 : i32
    return %arg0, %c0_i32_0, %2, %c0_i32_1 : i32, i32, i32, i32
  }
  func.func @transform_1(%arg0: i32, %arg1: i32, %arg2: i32) -> (i32, i32, i32, i32) {
    %c1_i32 = arith.constant 1 : i32
    %0 = arith.muli %arg1, %c1_i32 : i32
    %1 = arith.addi %0, %arg2 : i32
    %c0_i32 = arith.constant 0 : i32
    %2 = arith.minsi %1, %c0_i32 : i32
    %c0_i32_0 = arith.constant 0 : i32
    %c0_i32_1 = arith.constant 0 : i32
    %c0_i32_2 = arith.constant 0 : i32
    return %arg0, %c0_i32_0, %2, %c0_i32_1 : i32, i32, i32, i32
  }
  func.func @transform_2(%arg0: i32, %arg1: i32, %arg2: i32) -> (i32, i32, i32, i32) {
    %c0_i32 = arith.constant 0 : i32
    %c0_i32_0 = arith.constant 0 : i32
    %c0_i32_1 = arith.constant 0 : i32
    return %arg0, %arg1, %c0_i32, %c0_i32_0 : i32, i32, i32, i32
  }
}

</mosaic_0001>

<llo_original>
// kernel: dice_loss.1
$region0: #{dice_loss.1}
  #allocation0 [shape = 'u32[]', space=smem, size = 0x4, offset = 0x4, fixed_abs, tag = 'smem constant byte address 0x4 - core index']
  #allocation1 [shape = 'u32[144,128]{1,0:T(1,128)}', space=vmem, size = 0x12000, scoped, tag = 'internal scratch']
  #allocation2 [shape = 'f32[4,128]{1,0:T(4,128)}', space=vmem, size = 0x800, scoped, tag = 'scratch operand']
  #allocation3 [shape = 'f32[4,128]{1,0:T(4,128)}', space=vmem, size = 0x800, scoped, tag = 'scratch operand']
  #allocation4 [shape = 'f32[4,128]{1,0:T(4,128)}', space=vmem, size = 0x800, scoped, tag = 'scratch operand']
  %s0 = inlined_call_operand.vmem [shape: f32[2,4,2,128], index: 0, kind: input, shape index: {}]
  %s1 = inlined_call_operand.vmem [shape: s32[2,1,2,128], index: 1, kind: input, shape index: {}]
  %s2 = inlined_call_operand.vmem [shape: f32[2,1,4,3], index: 2, kind: output, shape index: {}]
  %s3 = sld [smem:[#allocation0]]
  $region49: #{dice_loss.1} parent=0
    _
  %s5 = ssub.s32 1, %s3
  %s6 = scalar_select 0, %s5, %s3
  loop: start=0, step=1, limit=4
  $region2: #{dice_loss.1} parent=0 // loop_pre_header
    _
  $region3: #{dice_loss.1} parent=0 // loop_header
    %s8 = sphi 0, %s12
    %p9 = scmp.ge.s32.totalorder %s8, 4
    %s15 = sphi 0, %s34
    %s16 = sphi 0, %s30
    %s17 = sphi 0, %s26
    %s18 = sphi 0, %s15
    %s19 = sphi 0, %s16
    %s20 = sphi 0, %s17
    %s21 = sphi 0, %s18
    %s22 = sphi 0, %s19
    %s23 = sphi 0, %s20
    %s45 = sphi 0, %s47
    %s48 = sphi 0, %s45
    %s49 = sphi 0, %s48
    %s65 = sphi 0, %s49
    %s79 = sphi 0, %s81
    %s82 = sphi 0, %s79
    %s83 = sphi 0, %s82
    %s99 = sphi 0, %s83
    %s107 = sphi 0, %s109
    %s110 = sphi 0, %s107
    %s111 = sphi 0, %s110
    %s127 = sphi 0, %s111
  $region4: #{dice_loss.1} parent=0 // loop_header_branch
    %11 = sbr.rel (%p9) target = $region8
  $region5: #{dice_loss.1} parent=0 // loop_body
    %s13 = ssub.s32 %s8, 1
    %s14 = ssub.s32 %s8, 2
    %s24 = sadd.s32 1, %s17
    %p25 = scmp.ge.s32.totalorder %s24, 1
    %s26 = scalar_select %p25, 0, %s24
    %s27 = sadd.s32 1, %s16
    %s28 = scalar_select %p25, %s27, %s16
    %p29 = scmp.ge.s32.totalorder %s28, 1
    %s30 = scalar_select %p29, 0, %s28
    %s31 = sadd.s32 1, %s15
    %s32 = scalar_select %p29, %s31, %s15
    %p33 = scmp.ge.s32.totalorder %s32, 2
    %s34 = scalar_select %p33, 0, %s32
    %s35 = sadd.s32 %s16, %s17
    %p36 = scmp.lt.s32.totalorder %s35, 0
    %s37 = scalar_select %p36, %s35, 0
    %s38 = sadd.s32 %s30, %s26
    %p39 = scmp.lt.s32.totalorder %s38, 0
    %s40 = scalar_select %p39, %s38, 0
    %s41 = ssub.s32 %s15, %s34
    %s42 = ssub.s32 %s37, %s40
    %s43 = sor.u32 %s41, %s42
    %p44 = scmp.eq.s32.totalorder %s43, 0
    %s46 = sadd.s32 %s45, 1
    %s47 = scalar_select %p44, %s45, %s46
    %p50 = pneg %p44
    %p51 = scmp.eq.s32.totalorder %s8, 1
    %p52 = por %p50, %p51
    %p53 = scmp.ne.s32.totalorder %s45, %s48
    %p54 = scmp.eq.s32.totalorder %s8, 0
    %p55 = por %p53, %p54
    %p56 = scmp.ne.s32.totalorder %s45, %s48
    %p57 = scmp.eq.s32.totalorder %s13, 1
    %p58 = por %p56, %p57
    %p59 = scmp.ne.s32.totalorder %s48, %s49
    %p60 = scmp.eq.s32.totalorder %s13, 0
    %p61 = por %p59, %p60
    %p62 = scmp.ne.s32.totalorder %s48, %s49
    %p63 = scmp.eq.s32.totalorder %s14, 1
    %p64 = por %p62, %p63
    %p66 = scmp.ne.s32.totalorder %s49, %s65
    %p67 = scmp.eq.s32.totalorder %s14, 0
    %p68 = por %p66, %p67
    %s69 = sadd.s32 %s16, %s17
    %p70 = scmp.lt.s32.totalorder %s69, 0
    %s71 = scalar_select %p70, %s69, 0
    %s72 = sadd.s32 %s30, %s26
    %p73 = scmp.lt.s32.totalorder %s72, 0
    %s74 = scalar_select %p73, %s72, 0
    %s75 = ssub.s32 %s15, %s34
    %s76 = ssub.s32 %s71, %s74
    %s77 = sor.u32 %s75, %s76
    %p78 = scmp.eq.s32.totalorder %s77, 0
    %s80 = sadd.s32 %s79, 1
    %s81 = scalar_select %p78, %s79, %s80
    %p84 = pneg %p78
    %p85 = scmp.eq.s32.totalorder %s8, 1
    %p86 = por %p84, %p85
    %p87 = scmp.ne.s32.totalorder %s79, %s82
    %p88 = scmp.eq.s32.totalorder %s8, 0
    %p89 = por %p87, %p88
    %p90 = scmp.ne.s32.totalorder %s79, %s82
    %p91 = scmp.eq.s32.totalorder %s13, 1
    %p92 = por %p90, %p91
    %p93 = scmp.ne.s32.totalorder %s82, %s83
    %p94 = scmp.eq.s32.totalorder %s13, 0
    %p95 = por %p93, %p94
    %p96 = scmp.ne.s32.totalorder %s82, %s83
    %p97 = scmp.eq.s32.totalorder %s14, 1
    %p98 = por %p96, %p97
    %p100 = scmp.ne.s32.totalorder %s83, %s99
    %p101 = scmp.eq.s32.totalorder %s14, 0
    %p102 = por %p100, %p101
    %s103 = ssub.s32 %s15, %s34
    %s104 = ssub.s32 %s16, %s30
    %s105 = sor.u32 %s103, %s104
    %p106 = scmp.eq.s32.totalorder %s105, 0
    %s108 = sadd.s32 %s107, 1
    %s109 = scalar_select %p106, %s107, %s108
    %p112 = pneg %p106
    %p113 = scmp.eq.s32.totalorder %s8, 1
    %p114 = por %p112, %p113
    %p115 = scmp.ne.s32.totalorder %s107, %s110
    %p116 = scmp.eq.s32.totalorder %s8, 0
    %p117 = por %p115, %p116
    %p118 = scmp.ne.s32.totalorder %s107, %s110
    %p119 = scmp.eq.s32.totalorder %s13, 1
    %p120 = por %p118, %p119
    %p121 = scmp.ne.s32.totalorder %s110, %s111
    %p122 = scmp.eq.s32.totalorder %s13, 0
    %p123 = por %p121, %p122
    %p124 = scmp.ne.s32.totalorder %s110, %s111
    %p125 = scmp.eq.s32.totalorder %s14, 1
    %p126 = por %p124, %p125
    %p128 = scmp.ne.s32.totalorder %s111, %s127
    %p129 = scmp.eq.s32.totalorder %s14, 0
    %p130 = por %p128, %p129
    %p131 = scmp.le.s32.totalorder 1, %s8
    %p132 = scmp.lt.s32.totalorder %s8, 3
    %p133 = pnand %p131, %p132
    %p134 = pneg %p133
    // Predicated region
    $region9: #{dice_loss.1} parent=5 // pred_check
      _
    $region10: #{dice_loss.1} parent=5 // pred_check_branch
      %136 = sbr.rel (%p133) target = $region12
    $region11: #{dice_loss.1} parent=5 // pred_region
      %s137 = ssub.s32 %s8, 1
    $region12: #{dice_loss.1} parent=5 // pred_fallthru
      _
    %p138 = scmp.lt.s32.totalorder %s8, 2
    // Predicated region
    $region13: #{dice_loss.1} parent=5 // pred_check
      %p139 = pneg %p138
    $region14: #{dice_loss.1} parent=5 // pred_check_branch
      %141 = sbr.rel (%p139) target = $region16
    $region15: #{dice_loss.1} parent=5 // pred_region
      // Predicated region
      $region17: #{dice_loss.1} parent=15 // pred_check
        %p142 = pneg %p55
      $region18: #{dice_loss.1} parent=15 // pred_check_branch
        %144 = sbr.rel (%p142) target = $region20
      $region19: #{dice_loss.1} parent=15 // pred_region
        %s145 = sadd.s32 %s16, %s17
        %p146 = scmp.lt.s32.totalorder %s145, 0
        %s147 = scalar_select %p146, %s145, 0
        %p148 = scmp.lt.s32.totalorder %s15, 1
        %s149 = scalar_select %p148, %s15, 1
        %p150 = scmp.lt.s32.totalorder %s147, 0
        %s151 = scalar_select %p150, %s147, 0
        %s152 = smul.addr %s149, 4
        %s153 = sadd.s32 %s151, %s152
        %s154 = smul.addr %s153, 2
        %s155 = scalar_lea.vmem %s0, %s154
        %s156 = sadd.s32 %s16, %s17
        %p157 = scmp.lt.s32.totalorder %s156, 0
        %s158 = scalar_select %p157, %s156, 0
      $region20: #{dice_loss.1} parent=15 // pred_fallthru
        _
      // Predicated region
      $region21: #{dice_loss.1} parent=15 // pred_check
        %p159 = pneg %p89
      $region22: #{dice_loss.1} parent=15 // pred_check_branch
        %161 = sbr.rel (%p159) target = $region24
      $region23: #{dice_loss.1} parent=15 // pred_region
        %s162 = sadd.s32 %s16, %s17
        %p163 = scmp.lt.s32.totalorder %s162, 0
        %s164 = scalar_select %p163, %s162, 0
        %p165 = scmp.lt.s32.totalorder %s15, 1
        %s166 = scalar_select %p165, %s15, 1
        %p167 = scmp.lt.s32.totalorder %s164, 0
        %s168 = scalar_select %p167, %s164, 0
        %s169 = sadd.s32 %s168, %s166
        %s170 = smul.addr %s169, 2
        %s171 = scalar_lea.vmem %s1, %s170
        %s172 = sadd.s32 %s16, %s17
        %p173 = scmp.lt.s32.totalorder %s172, 0
        %s174 = scalar_select %p173, %s172, 0
      $region24: #{dice_loss.1} parent=15 // pred_fallthru
        _
    $region16: #{dice_loss.1} parent=5 // pred_fallthru
      _
    %p175 = scmp.le.s32.totalorder 1, %s8
    %p176 = scmp.lt.s32.totalorder %s8, 3
    %p177 = pnand %p175, %p176
    %p178 = pneg %p177
    // Predicated region
    $region25: #{dice_loss.1} parent=5 // pred_check
      _
    $region26: #{dice_loss.1} parent=5 // pred_check_branch
      %180 = sbr.rel (%p177) target = $region28
    $region27: #{dice_loss.1} parent=5 // pred_region
      %s181 = ssub.s32 %s8, 1
      %s182 = sadd.s32 %s19, %s20
      %p183 = scmp.lt.s32.totalorder %s182, 0
      %s184 = scalar_select %p183, %s182, 0
      %p185 = scmp.lt.s32.totalorder %s18, 1
      %s186 = scalar_select %p185, %s18, 1
      %p187 = scmp.lt.s32.totalorder %s184, 0
      %s188 = scalar_select %p187, %s184, 0
      %s189 = smul.addr %s186, 4
      %s190 = sadd.s32 %s188, %s189
      %s191 = smul.addr %s190, 2
      %s192 = scalar_lea.vmem %s0, %s191
      %p193 = pneg %p61
      %p194 = pneg %p58
      %s195 = sadd.s32 %s19, %s20
      %p196 = scmp.lt.s32.totalorder %s195, 0
      %s197 = scalar_select %p196, %s195, 0
      %p198 = scmp.lt.s32.totalorder %s18, 1
      %s199 = scalar_select %p198, %s18, 1
      %p200 = scmp.lt.s32.totalorder %s197, 0
      %s201 = scalar_select %p200, %s197, 0
      %s202 = sadd.s32 %s201, %s199
      %s203 = smul.addr %s202, 2
      %s204 = scalar_lea.vmem %s1, %s203
      %p205 = pneg %p95
      %p206 = pneg %p92
      %p207 = pneg %p123
      %p208 = pneg %p120
      %p209 = scmp.lt.s32.totalorder %s18, 1
      %s210 = scalar_select %p209, %s18, 1
      %p211 = scmp.lt.s32.totalorder %s19, 0
      %s212 = scalar_select %p211, %s19, 0
      %s213 = sadd.s32 %s212, %s210
      %s214 = smul.addr %s213, 4
      %s215 = scalar_lea.vmem %s2, %s214
      %s216 = sadd.s32 %s19, %s20
      %p217 = scmp.lt.s32.totalorder %s216, 0
      %s218 = scalar_select %p217, %s216, 0
      %p219 = scmp.lt.s32.totalorder %s18, 1
      %s220 = scalar_select %p219, %s18, 1
      %p221 = scmp.lt.s32.totalorder %s218, 0
      %s222 = scalar_select %p221, %s218, 0
      %s223 = smul.addr %s220, 4
      %s224 = sadd.s32 %s222, %s223
      %s225 = smul.addr %s224, 2
      %s226 = scalar_lea.vmem %s0, %s225
      %s227 = sadd.s32 %s19, %s20
      %p228 = scmp.lt.s32.totalorder %s227, 0
      %s229 = scalar_select %p228, %s227, 0
      %s230 = sadd.s32 %s19, %s20
      %p231 = scmp.lt.s32.totalorder %s230, 0
      %s232 = scalar_select %p231, %s230, 0
      %p233 = scmp.lt.s32.totalorder %s18, 1
      %s234 = scalar_select %p233, %s18, 1
      %p235 = scmp.lt.s32.totalorder %s232, 0
      %s236 = scalar_select %p235, %s232, 0
      %s237 = sadd.s32 %s236, %s234
      %s238 = smul.addr %s237, 2
      %s239 = scalar_lea.vmem %s1, %s238
      %s240 = sadd.s32 %s19, %s20
      %p241 = scmp.lt.s32.totalorder %s240, 0
      %s242 = scalar_select %p241, %s240, 0
      %p243 = scmp.lt.s32.totalorder %s18, 1
      %s244 = scalar_select %p243, %s18, 1
      %p245 = scmp.lt.s32.totalorder %s19, 0
      %s246 = scalar_select %p245, %s19, 0
      %s247 = sadd.s32 %s246, %s244
      %s248 = smul.addr %s247, 4
      %s249 = scalar_lea.vmem %s2, %s248
      %p250 = scmp.eq.s32.totalorder %s20, 0
      // Predicated region
      $region29: #{dice_loss.1} parent=27 // pred_check
        %p251 = pneg %p250
      $region30: #{dice_loss.1} parent=27 // pred_check_branch
        %253 = sbr.rel (%p251) target = $region32
      $region31: #{dice_loss.1} parent=27 // pred_region
        %254 = vst [vmem:[#allocation2] sm:$0xf] 0.0
        %255 = vst [vmem:[#allocation3] sm:$0xf] 0.0
        %256 = vst [vmem:[#allocation4] sm:$0xf] 0.0
      $region32: #{dice_loss.1} parent=27 // pred_fallthru
        _
      %v257 = vld [vmem:[%s226] sm:$0x3]
      %v258 = vld [vmem:[%s226 + $0x2] sm:$0x3]
      %v259 = vld [vmem:[%s226 + $0x4] sm:$0x3]
      %v260 = vld [vmem:[%s226 + $0x6] sm:$0x3]
      %v261 = vld [vmem:[%s239] sm:$0x3]
      %vm262 = vcmp.eq.s32.totalorder %v261, 0
      %vm263 = vcmp.eq.s32.totalorder %v261, 1
      %vm264 = vcmp.eq.s32.totalorder %v261, 2
      %vm265 = vcmp.eq.s32.totalorder %v261, 3
      %v266 = vsel %vm262, 1, 0
      %v267 = vsel %vm263, 1, 0
      %v268 = vsel %vm264, 1, 0
      %v269 = vsel %vm265, 1, 0
      %v270 = vcvt.s32.f32 %v266
      %v271 = vcvt.s32.f32 %v267
      %v272 = vcvt.s32.f32 %v268
      %v273 = vcvt.s32.f32 %v269
      %v274 = vld [vmem:[#allocation2] sm:$0xf]
      %v275 = vmul.f32 %v257, %v270
      %v276 = vmul.f32 %v258, %v271
      %v277 = vmul.f32 %v259, %v272
      %v278 = vmul.f32 %v260, %v273
      %vm279 = vcmask 1041408
      %v280 = vsel %vm279, %v275, 0.0
      %v281 = vrot.slane %v280, 4
      %v282 = vadd.f32 %v280, %v281
      %v283 = vrot.slane %v282, 2
      %v284 = vadd.f32 %v282, %v283
      %v285 = vrot.slane %v284, 1
      %v286 = vadd.f32 %v284, %v285
      %v287 = vsel %vm279, %v276, 0.0
      %v288 = vrot.slane %v287, 4
      %v289 = vadd.f32 %v287, %v288
      %v290 = vrot.slane %v289, 2
      %v291 = vadd.f32 %v289, %v290
      %v292 = vrot.slane %v291, 1
      %v293 = vadd.f32 %v291, %v292
      %v294 = vsel %vm279, %v277, 0.0
      %v295 = vrot.slane %v294, 4
      %v296 = vadd.f32 %v294, %v295
      %v297 = vrot.slane %v296, 2
      %v298 = vadd.f32 %v296, %v297
      %v299 = vrot.slane %v298, 1
      %v300 = vadd.f32 %v298, %v299
      %v301 = vsel %vm279, %v278, 0.0
      %v302 = vrot.slane %v301, 4
      %v303 = vadd.f32 %v301, %v302
      %v304 = vrot.slane %v303, 2
      %v305 = vadd.f32 %v303, %v304
      %v306 = vrot.slane %v305, 1
      %v307 = vadd.f32 %v305, %v306
      %vm312 = vcmask 1041409
      %v313 = vsel %vm312, %v293, %v286
      %vm314 = vcmask 1042434
      %v315 = vsel %vm314, %v300, %v313
      %vm316 = vcmask 1043459
      %v317 = vsel %vm316, %v307, %v315
      %v319 = vadd.f32 %v274, %v317
      %320 = vst [vmem:[#allocation2] sm:$0xf] %v319
      %v321 = vld [vmem:[#allocation3] sm:$0xf]
      %v322 = vsel %vm279, %v270, 0.0
      %v323 = vrot.slane %v322, 4
      %v324 = vadd.f32 %v322, %v323
      %v325 = vrot.slane %v324, 2
      %v326 = vadd.f32 %v324, %v325
      %v327 = vrot.slane %v326, 1
      %v328 = vadd.f32 %v326, %v327
      %v329 = vsel %vm279, %v271, 0.0
      %v330 = vrot.slane %v329, 4
      %v331 = vadd.f32 %v329, %v330
      %v332 = vrot.slane %v331, 2
      %v333 = vadd.f32 %v331, %v332
      %v334 = vrot.slane %v333, 1
      %v335 = vadd.f32 %v333, %v334
      %v336 = vsel %vm279, %v272, 0.0
      %v337 = vrot.slane %v336, 4
      %v338 = vadd.f32 %v336, %v337
      %v339 = vrot.slane %v338, 2
      %v340 = vadd.f32 %v338, %v339
      %v341 = vrot.slane %v340, 1
      %v342 = vadd.f32 %v340, %v341
      %v343 = vsel %vm279, %v273, 0.0
      %v344 = vrot.slane %v343, 4
      %v345 = vadd.f32 %v343, %v344
      %v346 = vrot.slane %v345, 2
      %v347 = vadd.f32 %v345, %v346
      %v348 = vrot.slane %v347, 1
      %v349 = vadd.f32 %v347, %v348
      %v354 = vsel %vm312, %v335, %v328
      %v355 = vsel %vm314, %v342, %v354
      %v356 = vsel %vm316, %v349, %v355
      %v358 = vadd.f32 %v321, %v356
      %359 = vst [vmem:[#allocation3] sm:$0xf] %v358
      %v360 = vld [vmem:[#allocation4] sm:$0xf]
      %v361 = vmul.f32 %v257, %v257
      %v362 = vmul.f32 %v258, %v258
      %v363 = vmul.f32 %v259, %v259
      %v364 = vmul.f32 %v260, %v260
      %v365 = vsel %vm279, %v361, 0.0
      %v366 = vrot.slane %v365, 4
      %v367 = vadd.f32 %v365, %v366
      %v368 = vrot.slane %v367, 2
      %v369 = vadd.f32 %v367, %v368
      %v370 = vrot.slane %v369, 1
      %v371 = vadd.f32 %v369, %v370
      %v372 = vsel %vm279, %v362, 0.0
      %v373 = vrot.slane %v372, 4
      %v374 = vadd.f32 %v372, %v373
      %v375 = vrot.slane %v374, 2
      %v376 = vadd.f32 %v374, %v375
      %v377 = vrot.slane %v376, 1
      %v378 = vadd.f32 %v376, %v377
      %v379 = vsel %vm279, %v363, 0.0
      %v380 = vrot.slane %v379, 4
      %v381 = vadd.f32 %v379, %v380
      %v382 = vrot.slane %v381, 2
      %v383 = vadd.f32 %v381, %v382
      %v384 = vrot.slane %v383, 1
      %v385 = vadd.f32 %v383, %v384
      %v386 = vsel %vm279, %v364, 0.0
      %v387 = vrot.slane %v386, 4
      %v388 = vadd.f32 %v386, %v387
      %v389 = vrot.slane %v388, 2
      %v390 = vadd.f32 %v388, %v389
      %v391 = vrot.slane %v390, 1
      %v392 = vadd.f32 %v390, %v391
      %v397 = vsel %vm312, %v378, %v371
      %v398 = vsel %vm314, %v385, %v397
      %v399 = vsel %vm316, %v392, %v398
      %v401 = vadd.f32 %v360, %v399
      %402 = vst [vmem:[#allocation4] sm:$0xf] %v401
      // Predicated region
      $region33: #{dice_loss.1} parent=27 // pred_check
        %p403 = pneg %p250
      $region34: #{dice_loss.1} parent=27 // pred_check_branch
        %405 = sbr.rel (%p403) target = $region36
      $region35: #{dice_loss.1} parent=27 // pred_region
        %v406 = vld [vmem:[#allocation2] sm:$0xf]
        %vm407 = vcmask 1043456
        %v408 = vsel %vm407, %v406, 0.0
        %409 = vadd.xlane.f32.xlu0 %v408
        %v410 = vpop.xlane.xlu0 %409
        %vm411 = vcmask 3072
        %412 = vst.msk [vmem:[%s249] sm:$0xf] %vm411, %v410
        %v413 = vld [vmem:[#allocation3] sm:$0xf]
        %v414 = vsel %vm407, %v413, 0.0
        %415 = vadd.xlane.f32.xlu0 %v414
        %v416 = vpop.xlane.xlu0 %415
        %vm417 = vcmask 11272
        %418 = vst.msk [vmem:[%s249] sm:$0xf] %vm417, %v416
        %v419 = vld [vmem:[#allocation4] sm:$0xf]
        %v420 = vsel %vm407, %v419, 0.0
        %421 = vadd.xlane.f32.xlu0 %v420
        %v422 = vpop.xlane.xlu0 %421
        %vm423 = vcmask 19472
        %424 = vst.msk [vmem:[%s249] sm:$0xf] %vm423, %v422
      $region36: #{dice_loss.1} parent=27 // pred_fallthru
        _
      %p425 = scmp.lt.s32.totalorder %s18, 1
      %s426 = scalar_select %p425, %s18, 1
      %p427 = scmp.lt.s32.totalorder %s19, 0
      %s428 = scalar_select %p427, %s19, 0
      %s429 = sadd.s32 %s428, %s426
      %s430 = smul.addr %s429, 4
      %s431 = scalar_lea.vmem %s2, %s430
      // Predicated region
      $region37: #{dice_loss.1} parent=27 // pred_check
        %p432 = pneg %p120
      $region38: #{dice_loss.1} parent=27 // pred_check_branch
        %434 = sbr.rel (%p432) target = $region40
      $region39: #{dice_loss.1} parent=27 // pred_region
        _
      $region40: #{dice_loss.1} parent=27 // pred_fallthru
        _
    $region28: #{dice_loss.1} parent=5 // pred_fallthru
      _
    %p435 = scmp.le.s32.totalorder 2, %s8
    // Predicated region
    $region41: #{dice_loss.1} parent=5 // pred_check
      %p436 = pneg %p435
    $region42: #{dice_loss.1} parent=5 // pred_check_branch
      %438 = sbr.rel (%p436) target = $region44
    $region43: #{dice_loss.1} parent=5 // pred_region
      %s439 = ssub.s32 %s8, 2
      // Predicated region
      $region45: #{dice_loss.1} parent=43 // pred_check
        %p440 = pneg %p126
      $region46: #{dice_loss.1} parent=43 // pred_check_branch
        %442 = sbr.rel (%p440) target = $region48
      $region47: #{dice_loss.1} parent=43 // pred_region
        %p443 = scmp.lt.s32.totalorder %s21, 1
        %s444 = scalar_select %p443, %s21, 1
        %p445 = scmp.lt.s32.totalorder %s22, 0
        %s446 = scalar_select %p445, %s22, 0
        %s447 = sadd.s32 %s446, %s444
        %s448 = smul.addr %s447, 4
        %s449 = scalar_lea.vmem %s2, %s448
      $region48: #{dice_loss.1} parent=43 // pred_fallthru
        _
    $region44: #{dice_loss.1} parent=5 // pred_fallthru
      _
  $region6: #{dice_loss.1} parent=0 // loop_footer
    %s12 = sadd.s32 1, %s8
  $region7: #{dice_loss.1} parent=0 // loop_footer_branch
    %7 = sbr.rel target = $region3
  $region8: #{dice_loss.1} parent=0 // loop_exit
    _

</llo_original>
